<compile_context>
chip_gen: v7x
topology: tpu7x:2x2x1
jax: 0.10.0
libtpu: 0.0.40
codegen_flags: <defaults>
</compile_context>

<pallas_src>
import functools

import jax
import jax.numpy as jnp
from jax import lax
from jax.experimental import pallas as pl
from jax.experimental.pallas import tpu as pltpu


def _round_up(x, m):
    return (x + m - 1) // m * m


# ---------------------------------------------------------------------------
# Kernel: projections + attention + head-concat + output projection, fused
# ---------------------------------------------------------------------------
def _fused_attention_kernel(q_ref, k_ref, v_ref, wq_ref, wk_ref, wv_ref,
                            wo_ref, o_ref, qp_s, kp_s, vp_s, acc_s,
                            *, heads, pad_d):
    # q_ref: (1, TQ, E) bf16; k_ref/v_ref: (1, Lk, E)/(1, Lv, E) bf16
    # wq/wk/wv_ref: (E, Ep) head-block weights, 128-lane padded, bf16
    #   (scale already folded into wq).  wo_ref: (Ep, E) bf16.
    # o_ref: (1, TQ, E) f32.  Scratch: qp_s (TQ,Ep), kp_s (Lk,Ep),
    # vp_s (Lv,Ep) bf16; acc_s (TQ,E) f32.
    t = pl.program_id(1)

    # K/V projections: hoisted — computed once per batch element, reused for
    # every query tile (query-tile axis is "arbitrary", so this is safe).
    @pl.when(t == 0)
    def _():
        kp_s[...] = jnp.dot(k_ref[0], wk_ref[...],
                            preferred_element_type=jnp.float32
                            ).astype(jnp.bfloat16)
        vp_s[...] = jnp.dot(v_ref[0], wv_ref[...],
                            preferred_element_type=jnp.float32
                            ).astype(jnp.bfloat16)

    # Q projection for this query tile (1/sqrt(E) already folded into Wq).
    qp_s[...] = jnp.dot(q_ref[0], wq_ref[...],
                        preferred_element_type=jnp.float32).astype(jnp.bfloat16)

    acc_s[...] = jnp.zeros_like(acc_s)

    def head_body(h, carry):
        off = pl.multiple_of(h * pad_d, pad_d)          # 128-aligned slice
        qh = qp_s[:, pl.ds(off, pad_d)]                 # (TQ, pad_d) bf16
        kh = kp_s[:, pl.ds(off, pad_d)]                 # (Lk, pad_d) bf16
        vh = vp_s[:, pl.ds(off, pad_d)]                 # (Lv, pad_d) bf16

        # energy[q, k] = sum_d qh[q, d] * kh[k, d]  (no materialized K^T);
        # zero-padded head columns contribute exactly zero.
        energy = lax.dot_general(qh, kh, (((1,), (1,)), ((), ())),
                                 preferred_element_type=jnp.float32)  # (TQ,Lk)

        # numerically stable softmax over keys; f32 statistics, EUP reciprocal
        m = jnp.max(energy, axis=-1, keepdims=True)
        p = jnp.exp(energy - m)
        denom = jnp.sum(p, axis=-1, keepdims=True)
        attn = (p * pl.reciprocal(denom, approx=True)).astype(jnp.bfloat16)

        head_out = jnp.dot(attn, vh,
                           preferred_element_type=jnp.float32)  # (TQ, pad_d)

        # Fused head-concat + fc_out: acc += head_out @ Wo[pad-block h]
        acc_s[...] += jnp.dot(head_out.astype(jnp.bfloat16),
                              wo_ref[pl.ds(off, pad_d), :],
                              preferred_element_type=jnp.float32)
        return carry

    lax.fori_loop(0, heads, head_body, 0, unroll=(heads <= 4))

    o_ref[0] = acc_s[...].astype(o_ref.dtype)


# ---------------------------------------------------------------------------
# Wrapper-side weight preparation (trace time, once)
# ---------------------------------------------------------------------------
def _expand_head_weight(w_t, heads, head_dim, pad_d, scale=1.0):
    """(D, D) per-head weight W.T -> (E, heads*pad_d) block matrix where each
    head's D output columns sit at a 128-aligned offset (zero padded)."""
    e = heads * head_dim
    ep = heads * pad_d
    out = jnp.zeros((e, ep), jnp.float32)
    for h in range(heads):
        out = out.at[h * head_dim:(h + 1) * head_dim,
                     h * pad_d:h * pad_d + head_dim].set(w_t * scale)
    return out.astype(jnp.bfloat16)


def _expand_out_weight(w_o_t, heads, head_dim, pad_d):
    """(E, E) = W_o.T -> (heads*pad_d, E) with each head's D rows at a
    128-aligned offset (zero padded rows in between)."""
    e = w_o_t.shape[1]
    ep = heads * pad_d
    out = jnp.zeros((ep, e), jnp.float32)
    for h in range(heads):
        out = out.at[h * pad_d:h * pad_d + head_dim, :].set(
            w_o_t[h * head_dim:(h + 1) * head_dim, :])
    return out.astype(jnp.bfloat16)


# ---------------------------------------------------------------------------
# Wrapper
# ---------------------------------------------------------------------------
def self_attention_forward(values, keys, queries, mask, params, heads):
    """Pallas implementation of SelfAttention.forward.

    values/keys/queries: (N, L, embed_size) float32; `mask` is ignored
    (matches the reference forward, which never reads it).
    """
    del mask
    w_v, w_k, w_q, w_o = params
    N, Lq, E = queries.shape
    Lk = keys.shape[1]
    Lv = values.shape[1]
    D = E // heads
    scale = 1.0 / (float(E) ** 0.5)
    pad_d = _round_up(D, 128)          # 128-lane-aligned per-head blocks
    Ep = heads * pad_d

    # Weights: pre-transposed, head-block layout with 128-lane padding,
    # scale folded into Wq, cast to bf16 — all once at trace time.
    wq_p = _expand_head_weight(w_q.T, heads, D, pad_d, scale)
    wk_p = _expand_head_weight(w_k.T, heads, D, pad_d)
    wv_p = _expand_head_weight(w_v.T, heads, D, pad_d)
    wo_p = _expand_out_weight(w_o.T, heads, D, pad_d)

    # Activations to bf16 once in the wrapper (halves K/V VMEM + DMA size).
    q_in = queries.astype(jnp.bfloat16)
    k_in = keys.astype(jnp.bfloat16)
    v_in = values.astype(jnp.bfloat16)

    # Query-row tiling: 256-wide tiles for long sequences (MXU occupancy on
    # v6e/v7x), 128 for medium ones; pad Lq up and trim after (no unbounded
    # single-tile fallback).
    if Lq >= 256:
        tq = 256
    elif Lq >= 128:
        tq = 128
    else:
        tq = _round_up(Lq, 8)
    Lq_pad = _round_up(Lq, tq)
    if Lq_pad != Lq:
        q_in = jnp.pad(q_in, ((0, 0), (0, Lq_pad - Lq), (0, 0)))

    kernel = functools.partial(_fused_attention_kernel,
                               heads=heads, pad_d=pad_d)

    # Rough VMEM footprint (double-buffered blocks + weights + scratch) ->
    # scoped-vmem limit with headroom, clamped to a sane range.
    est_bytes = (2 * (2 * tq * E + 2 * Lk * E + 2 * Lv * E + 4 * tq * E)
                 + 2 * (3 * E * Ep * 2 + Ep * E * 2)
                 + 2 * (tq + Lk + Lv) * Ep + 4 * tq * E)
    vmem_limit = int(min(max(2 * est_bytes, 32 * 2**20), 100 * 2**20))

    out = pl.pallas_call(
        kernel,
        out_shape=jax.ShapeDtypeStruct((N, Lq_pad, E), jnp.float32),
        grid=(N, Lq_pad // tq),
        in_specs=[
            pl.BlockSpec((1, tq, E), lambda n, t: (n, t, 0)),   # queries
            pl.BlockSpec((1, Lk, E), lambda n, t: (n, 0, 0)),   # keys
            pl.BlockSpec((1, Lv, E), lambda n, t: (n, 0, 0)),   # values
            pl.BlockSpec((E, Ep), lambda n, t: (0, 0)),         # Wq (scaled)
            pl.BlockSpec((E, Ep), lambda n, t: (0, 0)),         # Wk
            pl.BlockSpec((E, Ep), lambda n, t: (0, 0)),         # Wv
            pl.BlockSpec((Ep, E), lambda n, t: (0, 0)),         # Wo
        ],
        out_specs=pl.BlockSpec((1, tq, E), lambda n, t: (n, t, 0)),
        scratch_shapes=[
            pltpu.VMEM((tq, Ep), jnp.bfloat16),   # projected Q (this tile)
            pltpu.VMEM((Lk, Ep), jnp.bfloat16),   # projected K (per batch n)
            pltpu.VMEM((Lv, Ep), jnp.bfloat16),   # projected V (per batch n)
            pltpu.VMEM((tq, E), jnp.float32),     # output accumulator
        ],
        compiler_params=pltpu.CompilerParams(
            dimension_semantics=("parallel", "arbitrary"),
            vmem_limit_bytes=vmem_limit),
    )(q_in, k_in, v_in, wq_p, wk_p, wv_p, wo_p)

    if Lq_pad != Lq:
        out = out[:, :Lq, :]
    return out


# ---------------------------------------------------------------------------
# Pure-JAX reference (mirrors the PyTorch forward exactly, f32 end to end)
# ---------------------------------------------------------------------------
def self_attention_ref(values, keys, queries, params, heads):
    w_v, w_k, w_q, w_o = params
    N, Lq, E = queries.shape
    D = E // heads
    v = values.reshape(N, -1, heads, D) @ w_v.T
    k = keys.reshape(N, -1, heads, D) @ w_k.T
    q = queries.reshape(N, -1, heads, D) @ w_q.T
    energy = jnp.einsum('nqhd,nkhd->nhqk', q, k)
    attn = jax.nn.softmax(energy / (float(E) ** 0.5), axis=3)
    out = jnp.einsum('nhql,nlhd->nqhd', attn, v)
    out = out.reshape(N, Lq, E)
    return out @ w_o.T


# ---------------------------------------------------------------------------
if __name__ == "__main__":
    # Small shapes consistent with the module: embed_size=32, heads=2,
    # head_dim=16, batch N=2, seq lengths = 8.
    embed_size, heads = 32, 2
    head_dim = embed_size // heads
    N, seq = 2, 8

    key = jax.random.PRNGKey(0)
    kv, kk, kq, ko, kx1, kx2, kx3 = jax.random.split(key, 7)

    # Deterministic nn.Linear-style init (uniform(-1/sqrt(fan_in), 1/sqrt(fan_in))).
    def linear_init(k, out_f, in_f):
        bound = 1.0 / (in_f ** 0.5)
        return jax.random.uniform(k, (out_f, in_f), jnp.float32, -bound, bound)

    w_v = linear_init(kv, head_dim, head_dim)
    w_k = linear_init(kk, head_dim, head_dim)
    w_q = linear_init(kq, head_dim, head_dim)
    w_o = linear_init(ko, embed_size, heads * head_dim)
    params = (w_v, w_k, w_q, w_o)

    values = jax.random.normal(kx1, (N, seq, embed_size), jnp.float32)
    keys_in = jax.random.normal(kx2, (N, seq, embed_size), jnp.float32)
    queries = jax.random.normal(kx3, (N, seq, embed_size), jnp.float32)
    mask = None  # unused by the reference forward

    out = self_attention_forward(values, keys_in, queries, mask, params, heads)
    out = jax.block_until_ready(out)

    ref = self_attention_ref(values, keys_in, queries, params, heads)
    assert out.shape == (N, seq, embed_size)
    # bf16 MXU operands (f32 accumulation) + approx reciprocal -> relaxed
    # tolerance vs the f32 reference.
    assert jnp.allclose(out, ref, atol=5e-2, rtol=5e-2), "mismatch vs reference"

    print("KERNEL_OK")
</pallas_src>

<mosaic_0001>
module attributes {stable_mosaic.version = 11 : i64} {
  func.func @_fused_attention_kernel(%arg0: i32, %arg1: i32, %arg2: memref<1x8x32xbf16, #tpu.memory_space<vmem>>, %arg3: memref<1x8x32xbf16, #tpu.memory_space<vmem>>, %arg4: memref<1x8x32xbf16, #tpu.memory_space<vmem>>, %arg5: memref<32x256xbf16, #tpu.memory_space<vmem>>, %arg6: memref<32x256xbf16, #tpu.memory_space<vmem>>, %arg7: memref<32x256xbf16, #tpu.memory_space<vmem>>, %arg8: memref<256x32xbf16, #tpu.memory_space<vmem>>, %arg9: memref<1x8x32xf32, #tpu.memory_space<vmem>>, %arg10: memref<8x256xbf16, #tpu.memory_space<vmem>>, %arg11: memref<8x256xbf16, #tpu.memory_space<vmem>>, %arg12: memref<8x256xbf16, #tpu.memory_space<vmem>>, %arg13: memref<8x32xf32, #tpu.memory_space<vmem>>) attributes {dimension_semantics = [#tpu.dimension_semantics<parallel>, #tpu.dimension_semantics<arbitrary>], iteration_bounds = array<i64: 2, 1>, scalar_prefetch = 0 : i64, scratch_operands = 4 : i64, tpu.core_type = #tpu.core_type<tc>, window_params = [{transform_indices = @transform_0, window_bounds = array<i64: 1, 8, 32>}, {transform_indices = @transform_1, window_bounds = array<i64: 1, 8, 32>}, {transform_indices = @transform_2, window_bounds = array<i64: 1, 8, 32>}, {pipeline_mode = #tpu.pipeline_mode<synchronous>, transform_indices = @transform_3, window_bounds = array<i64: 32, 256>}, {pipeline_mode = #tpu.pipeline_mode<synchronous>, transform_indices = @transform_4, window_bounds = array<i64: 32, 256>}, {pipeline_mode = #tpu.pipeline_mode<synchronous>, transform_indices = @transform_5, window_bounds = array<i64: 32, 256>}, {pipeline_mode = #tpu.pipeline_mode<synchronous>, transform_indices = @transform_6, window_bounds = array<i64: 256, 32>}, {transform_indices = @transform_7, window_bounds = array<i64: 1, 8, 32>}]} {
    %c0_i32 = arith.constant 0 : i32
    %0 = arith.cmpi eq, %arg1, %c0_i32 : i32
    %1 = arith.extui %0 : i1 to i32
    %c0_i32_0 = arith.constant 0 : i32
    %2 = arith.cmpi ne, %1, %c0_i32_0 : i32
    scf.if %2 {
      %c0_43 = arith.constant 0 : index
      %c0_44 = arith.constant 0 : index
      %c0_45 = arith.constant 0 : index
      %71 = vector.load %arg3[%c0_43, %c0_44, %c0_45] : memref<1x8x32xbf16, #tpu.memory_space<vmem>>, vector<1x8x32xbf16>
      %72 = vector.shape_cast %71 : vector<1x8x32xbf16> to vector<8x32xbf16>
      %c0_46 = arith.constant 0 : index
      %c0_47 = arith.constant 0 : index
      %73 = vector.load %arg6[%c0_46, %c0_47] : memref<32x256xbf16, #tpu.memory_space<vmem>>, vector<32x256xbf16>
      %cst_48 = arith.constant dense<0.000000e+00> : vector<8x256xf32>
      %74 = tpu.matmul %72, %73, %cst_48 {dimension_numbers = #tpu.dot_dimension_numbers<[1], [0], [0], [1], [0, 0, 1, 1], [], []>} : vector<8x32xbf16>, vector<32x256xbf16>, vector<8x256xf32> -> vector<8x256xf32>
      %75 = arith.truncf %74 : vector<8x256xf32> to vector<8x256xbf16>
      %c0_49 = arith.constant 0 : index
      %c0_50 = arith.constant 0 : index
      %76 = vector.load %arg11[%c0_49, %c0_50] : memref<8x256xbf16, #tpu.memory_space<vmem>>, vector<8x256xbf16>
      tpu.vector_store %arg11[%c0_49, %c0_50], %75 {strides = array<i32>} : memref<8x256xbf16, #tpu.memory_space<vmem>>, vector<8x256xbf16>,
      %c0_51 = arith.constant 0 : index
      %c0_52 = arith.constant 0 : index
      %c0_53 = arith.constant 0 : index
      %77 = vector.load %arg4[%c0_51, %c0_52, %c0_53] : memref<1x8x32xbf16, #tpu.memory_space<vmem>>, vector<1x8x32xbf16>
      %78 = vector.shape_cast %77 : vector<1x8x32xbf16> to vector<8x32xbf16>
      %c0_54 = arith.constant 0 : index
      %c0_55 = arith.constant 0 : index
      %79 = vector.load %arg7[%c0_54, %c0_55] : memref<32x256xbf16, #tpu.memory_space<vmem>>, vector<32x256xbf16>
      %cst_56 = arith.constant dense<0.000000e+00> : vector<8x256xf32>
      %80 = tpu.matmul %78, %79, %cst_56 {dimension_numbers = #tpu.dot_dimension_numbers<[1], [0], [0], [1], [0, 0, 1, 1], [], []>} : vector<8x32xbf16>, vector<32x256xbf16>, vector<8x256xf32> -> vector<8x256xf32>
      %81 = arith.truncf %80 : vector<8x256xf32> to vector<8x256xbf16>
      %c0_57 = arith.constant 0 : index
      %c0_58 = arith.constant 0 : index
      %82 = vector.load %arg12[%c0_57, %c0_58] : memref<8x256xbf16, #tpu.memory_space<vmem>>, vector<8x256xbf16>
      tpu.vector_store %arg12[%c0_57, %c0_58], %81 {strides = array<i32>} : memref<8x256xbf16, #tpu.memory_space<vmem>>, vector<8x256xbf16>,
    } else {
    }
    %c0 = arith.constant 0 : index
    %c0_1 = arith.constant 0 : index
    %c0_2 = arith.constant 0 : index
    %3 = vector.load %arg2[%c0, %c0_1, %c0_2] : memref<1x8x32xbf16, #tpu.memory_space<vmem>>, vector<1x8x32xbf16>
    %4 = vector.shape_cast %3 : vector<1x8x32xbf16> to vector<8x32xbf16>
    %c0_3 = arith.constant 0 : index
    %c0_4 = arith.constant 0 : index
    %5 = vector.load %arg5[%c0_3, %c0_4] : memref<32x256xbf16, #tpu.memory_space<vmem>>, vector<32x256xbf16>
    %cst = arith.constant dense<0.000000e+00> : vector<8x256xf32>
    %6 = tpu.matmul %4, %5, %cst {dimension_numbers = #tpu.dot_dimension_numbers<[1], [0], [0], [1], [0, 0, 1, 1], [], []>} : vector<8x32xbf16>, vector<32x256xbf16>, vector<8x256xf32> -> vector<8x256xf32>
    %7 = arith.truncf %6 : vector<8x256xf32> to vector<8x256xbf16>
    %c0_5 = arith.constant 0 : index
    %c0_6 = arith.constant 0 : index
    %8 = vector.load %arg10[%c0_5, %c0_6] : memref<8x256xbf16, #tpu.memory_space<vmem>>, vector<8x256xbf16>
    tpu.vector_store %arg10[%c0_5, %c0_6], %7 {strides = array<i32>} : memref<8x256xbf16, #tpu.memory_space<vmem>>, vector<8x256xbf16>,
    %cst_7 = arith.constant 0.000000e+00 : f32
    %9 = vector.broadcast %cst_7 : f32 to vector<8x32xf32>
    %c0_8 = arith.constant 0 : index
    %c0_9 = arith.constant 0 : index
    %10 = vector.load %arg13[%c0_8, %c0_9] : memref<8x32xf32, #tpu.memory_space<vmem>>, vector<8x32xf32>
    tpu.vector_store %arg13[%c0_8, %c0_9], %9 {strides = array<i32>} : memref<8x32xf32, #tpu.memory_space<vmem>>, vector<8x32xf32>,
    %c0_i32_10 = arith.constant 0 : i32
    %c128_i32 = arith.constant 128 : i32
    %11 = arith.muli %c0_i32_10, %c128_i32 : i32
    %12 = tpu.assume_multiple %11, 128 : i32
    %c0_11 = arith.constant 0 : index
    %13 = arith.index_cast %12 : i32 to index
    %14 = vector.load %arg10[%c0_11, %13] : memref<8x256xbf16, #tpu.memory_space<vmem>>, vector<8x128xbf16>
    %c0_12 = arith.constant 0 : index
    %15 = arith.index_cast %12 : i32 to index
    %16 = vector.load %arg11[%c0_12, %15] : memref<8x256xbf16, #tpu.memory_space<vmem>>, vector<8x128xbf16>
    %c0_13 = arith.constant 0 : index
    %17 = arith.index_cast %12 : i32 to index
    %18 = vector.load %arg12[%c0_13, %17] : memref<8x256xbf16, #tpu.memory_space<vmem>>, vector<8x128xbf16>
    %cst_14 = arith.constant dense<0.000000e+00> : vector<8x8xf32>
    %19 = tpu.matmul %14, %16, %cst_14 {dimension_numbers = #tpu.dot_dimension_numbers<[1], [1], [0], [0], [0, 0, 1, 0], [], []>} : vector<8x128xbf16>, vector<8x128xbf16>, vector<8x8xf32> -> vector<8x8xf32>
    %cst_15 = arith.constant dense<0xFF800000> : vector<8xf32>
    %20 = vector.multi_reduction <maximumf>, %19, %cst_15 [1] : vector<8x8xf32> to vector<8xf32>
    %21 = vector.shape_cast %20 : vector<8xf32> to vector<8x1xf32>
    %22 = vector.broadcast %21 : vector<8x1xf32> to vector<8x8xf32>
    %23 = arith.subf %19, %22 : vector<8x8xf32>
    %24 = math.exp %23 : vector<8x8xf32>
    %cst_16 = arith.constant dense<0.000000e+00> : vector<8xf32>
    %25 = vector.multi_reduction <add>, %24, %cst_16 [1] : vector<8x8xf32> to vector<8xf32>
    %26 = vector.shape_cast %25 : vector<8xf32> to vector<8x1xf32>
    %27 = tpu.reciprocal %26 {approx = true} : vector<8x1xf32> -> vector<8x1xf32>
    %28 = vector.broadcast %27 : vector<8x1xf32> to vector<8x8xf32>
    %29 = arith.mulf %24, %28 : vector<8x8xf32>
    %30 = arith.truncf %29 : vector<8x8xf32> to vector<8x8xbf16>
    %cst_17 = arith.constant dense<0.000000e+00> : vector<8x128xf32>
    %31 = tpu.matmul %30, %18, %cst_17 {dimension_numbers = #tpu.dot_dimension_numbers<[1], [0], [0], [1], [0, 0, 1, 1], [], []>} : vector<8x8xbf16>, vector<8x128xbf16>, vector<8x128xf32> -> vector<8x128xf32>
    %c0_18 = arith.constant 0 : index
    %c0_19 = arith.constant 0 : index
    %32 = vector.load %arg13[%c0_18, %c0_19] : memref<8x32xf32, #tpu.memory_space<vmem>>, vector<8x32xf32>
    %33 = arith.truncf %31 : vector<8x128xf32> to vector<8x128xbf16>
    %34 = arith.index_cast %12 : i32 to index
    %c0_20 = arith.constant 0 : index
    %35 = vector.load %arg8[%34, %c0_20] : memref<256x32xbf16, #tpu.memory_space<vmem>>, vector<128x32xbf16>
    %cst_21 = arith.constant dense<0.000000e+00> : vector<8x32xf32>
    %36 = tpu.matmul %33, %35, %cst_21 {dimension_numbers = #tpu.dot_dimension_numbers<[1], [0], [0], [1], [0, 0, 1, 1], [], []>} : vector<8x128xbf16>, vector<128x32xbf16>, vector<8x32xf32> -> vector<8x32xf32>
    %37 = arith.addf %32, %36 : vector<8x32xf32>
    %c0_22 = arith.constant 0 : index
    %c0_23 = arith.constant 0 : index
    %38 = vector.load %arg13[%c0_22, %c0_23] : memref<8x32xf32, #tpu.memory_space<vmem>>, vector<8x32xf32>
    tpu.vector_store %arg13[%c0_22, %c0_23], %37 {strides = array<i32>} : memref<8x32xf32, #tpu.memory_space<vmem>>, vector<8x32xf32>,
    %c1_i32 = arith.constant 1 : i32
    %c128_i32_24 = arith.constant 128 : i32
    %39 = arith.muli %c1_i32, %c128_i32_24 : i32
    %40 = tpu.assume_multiple %39, 128 : i32
    %c0_25 = arith.constant 0 : index
    %41 = arith.index_cast %40 : i32 to index
    %42 = vector.load %arg10[%c0_25, %41] : memref<8x256xbf16, #tpu.memory_space<vmem>>, vector<8x128xbf16>
    %c0_26 = arith.constant 0 : index
    %43 = arith.index_cast %40 : i32 to index
    %44 = vector.load %arg11[%c0_26, %43] : memref<8x256xbf16, #tpu.memory_space<vmem>>, vector<8x128xbf16>
    %c0_27 = arith.constant 0 : index
    %45 = arith.index_cast %40 : i32 to index
    %46 = vector.load %arg12[%c0_27, %45] : memref<8x256xbf16, #tpu.memory_space<vmem>>, vector<8x128xbf16>
    %cst_28 = arith.constant dense<0.000000e+00> : vector<8x8xf32>
    %47 = tpu.matmul %42, %44, %cst_28 {dimension_numbers = #tpu.dot_dimension_numbers<[1], [1], [0], [0], [0, 0, 1, 0], [], []>} : vector<8x128xbf16>, vector<8x128xbf16>, vector<8x8xf32> -> vector<8x8xf32>
    %cst_29 = arith.constant dense<0xFF800000> : vector<8xf32>
    %48 = vector.multi_reduction <maximumf>, %47, %cst_29 [1] : vector<8x8xf32> to vector<8xf32>
    %49 = vector.shape_cast %48 : vector<8xf32> to vector<8x1xf32>
    %50 = vector.broadcast %49 : vector<8x1xf32> to vector<8x8xf32>
    %51 = arith.subf %47, %50 : vector<8x8xf32>
    %52 = math.exp %51 : vector<8x8xf32>
    %cst_30 = arith.constant dense<0.000000e+00> : vector<8xf32>
    %53 = vector.multi_reduction <add>, %52, %cst_30 [1] : vector<8x8xf32> to vector<8xf32>
    %54 = vector.shape_cast %53 : vector<8xf32> to vector<8x1xf32>
    %55 = tpu.reciprocal %54 {approx = true} : vector<8x1xf32> -> vector<8x1xf32>
    %56 = vector.broadcast %55 : vector<8x1xf32> to vector<8x8xf32>
    %57 = arith.mulf %52, %56 : vector<8x8xf32>
    %58 = arith.truncf %57 : vector<8x8xf32> to vector<8x8xbf16>
    %cst_31 = arith.constant dense<0.000000e+00> : vector<8x128xf32>
    %59 = tpu.matmul %58, %46, %cst_31 {dimension_numbers = #tpu.dot_dimension_numbers<[1], [0], [0], [1], [0, 0, 1, 1], [], []>} : vector<8x8xbf16>, vector<8x128xbf16>, vector<8x128xf32> -> vector<8x128xf32>
    %c0_32 = arith.constant 0 : index
    %c0_33 = arith.constant 0 : index
    %60 = vector.load %arg13[%c0_32, %c0_33] : memref<8x32xf32, #tpu.memory_space<vmem>>, vector<8x32xf32>
    %61 = arith.truncf %59 : vector<8x128xf32> to vector<8x128xbf16>
    %62 = arith.index_cast %40 : i32 to index
    %c0_34 = arith.constant 0 : index
    %63 = vector.load %arg8[%62, %c0_34] : memref<256x32xbf16, #tpu.memory_space<vmem>>, vector<128x32xbf16>
    %cst_35 = arith.constant dense<0.000000e+00> : vector<8x32xf32>
    %64 = tpu.matmul %61, %63, %cst_35 {dimension_numbers = #tpu.dot_dimension_numbers<[1], [0], [0], [1], [0, 0, 1, 1], [], []>} : vector<8x128xbf16>, vector<128x32xbf16>, vector<8x32xf32> -> vector<8x32xf32>
    %65 = arith.addf %60, %64 : vector<8x32xf32>
    %c0_36 = arith.constant 0 : index
    %c0_37 = arith.constant 0 : index
    %66 = vector.load %arg13[%c0_36, %c0_37] : memref<8x32xf32, #tpu.memory_space<vmem>>, vector<8x32xf32>
    tpu.vector_store %arg13[%c0_36, %c0_37], %65 {strides = array<i32>} : memref<8x32xf32, #tpu.memory_space<vmem>>, vector<8x32xf32>,
    %c2_i32 = arith.constant 2 : i32
    %c0_38 = arith.constant 0 : index
    %c0_39 = arith.constant 0 : index
    %67 = vector.load %arg13[%c0_38, %c0_39] : memref<8x32xf32, #tpu.memory_space<vmem>>, vector<8x32xf32>
    %c0_40 = arith.constant 0 : index
    %c0_41 = arith.constant 0 : index
    %c0_42 = arith.constant 0 : index
    %68 = vector.load %arg9[%c0_40, %c0_41, %c0_42] : memref<1x8x32xf32, #tpu.memory_space<vmem>>, vector<1x8x32xf32>
    %69 = vector.shape_cast %68 : vector<1x8x32xf32> to vector<8x32xf32>
    %70 = vector.shape_cast %67 : vector<8x32xf32> to vector<1x8x32xf32>
    tpu.vector_store %arg9[%c0_40, %c0_41, %c0_42], %70 {strides = array<i32>} : memref<1x8x32xf32, #tpu.memory_space<vmem>>, vector<1x8x32xf32>,
    return
  }
  func.func @transform_0(%arg0: i32, %arg1: i32) -> (i32, i32, i32) {
    %c0_i32 = arith.constant 0 : i32
    %c0_i32_0 = arith.constant 0 : i32
    return %arg0, %arg1, %c0_i32 : i32, i32, i32
  }
  func.func @transform_1(%arg0: i32, %arg1: i32) -> (i32, i32, i32) {
    %c0_i32 = arith.constant 0 : i32
    %c0_i32_0 = arith.constant 0 : i32
    %c0_i32_1 = arith.constant 0 : i32
    return %arg0, %c0_i32, %c0_i32_0 : i32, i32, i32
  }
  func.func @transform_2(%arg0: i32, %arg1: i32) -> (i32, i32, i32) {
    %c0_i32 = arith.constant 0 : i32
    %c0_i32_0 = arith.constant 0 : i32
    %c0_i32_1 = arith.constant 0 : i32
    return %arg0, %c0_i32, %c0_i32_0 : i32, i32, i32
  }
  func.func @transform_3(%arg0: i32, %arg1: i32) -> (i32, i32) {
    %c0_i32 = arith.constant 0 : i32
    %c0_i32_0 = arith.constant 0 : i32
    %c0_i32_1 = arith.constant 0 : i32
    return %c0_i32, %c0_i32_0 : i32, i32
  }
  func.func @transform_4(%arg0: i32, %arg1: i32) -> (i32, i32) {
    %c0_i32 = arith.constant 0 : i32
    %c0_i32_0 = arith.constant 0 : i32
    %c0_i32_1 = arith.constant 0 : i32
    return %c0_i32, %c0_i32_0 : i32, i32
  }
  func.func @transform_5(%arg0: i32, %arg1: i32) -> (i32, i32) {
    %c0_i32 = arith.constant 0 : i32
    %c0_i32_0 = arith.constant 0 : i32
    %c0_i32_1 = arith.constant 0 : i32
    return %c0_i32, %c0_i32_0 : i32, i32
  }
  func.func @transform_6(%arg0: i32, %arg1: i32) -> (i32, i32) {
    %c0_i32 = arith.constant 0 : i32
    %c0_i32_0 = arith.constant 0 : i32
    %c0_i32_1 = arith.constant 0 : i32
    return %c0_i32, %c0_i32_0 : i32, i32
  }
  func.func @transform_7(%arg0: i32, %arg1: i32) -> (i32, i32, i32) {
    %c0_i32 = arith.constant 0 : i32
    %c0_i32_0 = arith.constant 0 : i32
    return %arg0, %arg1, %c0_i32 : i32, i32, i32
  }
}

</mosaic_0001>

<llo_original>
// kernel: tpu_custom_call.1
$region0: #{tpu_custom_call.1}
  #allocation0 [shape = 'u32[]', space=smem, size = 0x4, offset = 0x4, fixed_abs, tag = 'smem constant byte address 0x4 - core index']
  #allocation1 [shape = 'u32[144,128]{1,0:T(1,128)}', space=vmem, size = 0x12000, scoped, tag = 'internal scratch']
  #allocation2 [shape = 'bf16[8,256]{1,0:T(8,128)(2,1)}', space=vmem, size = 0x1000, scoped, tag = 'scratch operand']
  #allocation3 [shape = 'bf16[8,256]{1,0:T(8,128)(2,1)}', space=vmem, size = 0x1000, scoped, tag = 'scratch operand']
  #allocation4 [shape = 'bf16[8,256]{1,0:T(8,128)(2,1)}', space=vmem, size = 0x1000, scoped, tag = 'scratch operand']
  #allocation5 [shape = 'f32[8,32]{1,0:T(8,128)}', space=vmem, size = 0x1000, scoped, tag = 'scratch operand']
  %s0 = inlined_call_operand.vmem [shape: bf16[2,8,32], index: 0, kind: input, shape index: {}]
  %s1 = inlined_call_operand.vmem [shape: bf16[2,8,32], index: 1, kind: input, shape index: {}]
  %s2 = inlined_call_operand.vmem [shape: bf16[2,8,32], index: 2, kind: input, shape index: {}]
  %s3 = inlined_call_operand.vmem [shape: bf16[32,256], index: 3, kind: input, shape index: {}]
  %s4 = inlined_call_operand.vmem [shape: bf16[32,256], index: 4, kind: input, shape index: {}]
  %s5 = inlined_call_operand.vmem [shape: bf16[32,256], index: 5, kind: input, shape index: {}]
  %s6 = inlined_call_operand.vmem [shape: bf16[256,32], index: 6, kind: input, shape index: {}]
  %s7 = inlined_call_operand.hbm [shape: f32[2,8,32], index: 7, kind: output, shape index: {}]
  %s8 = sld [smem:[#allocation0]]
  $region65: #{tpu_custom_call.1} parent=0
    _
  %s10 = ssub.s32 1, %s8
  %s11 = scalar_select 0, %s10, %s8
  $region1: #{tpu_custom_call.1} parent=0
    #allocation6 [shape = 'u8[8192]{0}', space=vmem, size = 0x2000, scoped, tag = 'output window, operand 0']
    #allocation7 [shape = 's32[2]{0}', space=sflag, size = 0x8, scoped, tag = 'scoped memory for tpu_custom_call.1']
    %12 = vsyncpa [#allocation7], 0
    %s13 = scalar_lea.sflag [#allocation7], 1
    %14 = vsyncpa %s13, 0
    loop: start=0, step=1, limit=4
    $region2: #{tpu_custom_call.1} parent=1 // loop_pre_header
      _
    $region3: #{tpu_custom_call.1} parent=1 // loop_header
      %s16 = sphi 0, %s20
      %p17 = scmp.ge.s32.totalorder %s16, 4
      %s23 = sphi 0, %s35
      %s24 = sphi 0, %s31
      %s25 = sphi 0, %s23
      %s26 = sphi 0, %s24
      %s27 = sphi 0, %s25
      %s28 = sphi 0, %s26
      %s40 = sphi 0, %s42
      %s43 = sphi 0, %s40
      %s44 = sphi 0, %s43
      %s60 = sphi 0, %s44
      %s66 = sphi 0, %s68
      %s69 = sphi 0, %s66
      %s70 = sphi 0, %s69
      %s86 = sphi 0, %s70
      %s92 = sphi 0, %s94
      %s95 = sphi 0, %s92
      %s96 = sphi 0, %s95
      %s112 = sphi 0, %s96
      %s116 = sphi 0, %s116
      %s118 = sphi 0, %s116
      %s119 = sphi 0, %s118
      %s133 = sphi 0, %s119
      %s137 = sphi 0, %s137
      %s139 = sphi 0, %s137
      %s140 = sphi 0, %s139
      %s154 = sphi 0, %s140
      %s158 = sphi 0, %s158
      %s160 = sphi 0, %s158
      %s161 = sphi 0, %s160
      %s175 = sphi 0, %s161
      %s179 = sphi 0, %s179
      %s181 = sphi 0, %s179
      %s182 = sphi 0, %s181
      %s196 = sphi 0, %s182
      %s204 = sphi 0, %s206
      %s207 = sphi 0, %s204
      %s208 = sphi 0, %s207
      %s224 = sphi 0, %s208
    $region4: #{tpu_custom_call.1} parent=1 // loop_header_branch
      %19 = sbr.rel (%p17) target = $region8
    $region5: #{tpu_custom_call.1} parent=1 // loop_body
      %s21 = ssub.s32 %s16, 1
      %s22 = ssub.s32 %s16, 2
      %s29 = sadd.s32 1, %s24
      %p30 = scmp.ge.s32.totalorder %s29, 1
      %s31 = scalar_select %p30, 0, %s29
      %s32 = sadd.s32 1, %s23
      %s33 = scalar_select %p30, %s32, %s23
      %p34 = scmp.ge.s32.totalorder %s33, 2
      %s35 = scalar_select %p34, 0, %s33
      %s36 = ssub.s32 %s23, %s35
      %s37 = ssub.s32 %s24, %s31
      %s38 = sor.u32 %s36, %s37
      %p39 = scmp.eq.s32.totalorder %s38, 0
      %s41 = sadd.s32 %s40, 1
      %s42 = scalar_select %p39, %s40, %s41
      %p45 = pneg %p39
      %p46 = scmp.eq.s32.totalorder %s16, 1
      %p47 = por %p45, %p46
      %p48 = scmp.ne.s32.totalorder %s40, %s43
      %p49 = scmp.eq.s32.totalorder %s16, 0
      %p50 = por %p48, %p49
      %p51 = scmp.ne.s32.totalorder %s40, %s43
      %p52 = scmp.eq.s32.totalorder %s21, 1
      %p53 = por %p51, %p52
      %p54 = scmp.ne.s32.totalorder %s43, %s44
      %p55 = scmp.eq.s32.totalorder %s21, 0
      %p56 = por %p54, %p55
      %p57 = scmp.ne.s32.totalorder %s43, %s44
      %p58 = scmp.eq.s32.totalorder %s22, 1
      %p59 = por %p57, %p58
      %p61 = scmp.ne.s32.totalorder %s44, %s60
      %p62 = scmp.eq.s32.totalorder %s22, 0
      %p63 = por %p61, %p62
      %s64 = ssub.s32 %s23, %s35
      %p65 = scmp.eq.s32.totalorder %s64, 0
      %s67 = sadd.s32 %s66, 1
      %s68 = scalar_select %p65, %s66, %s67
      %p71 = pneg %p65
      %p72 = scmp.eq.s32.totalorder %s16, 1
      %p73 = por %p71, %p72
      %p74 = scmp.ne.s32.totalorder %s66, %s69
      %p75 = scmp.eq.s32.totalorder %s16, 0
      %p76 = por %p74, %p75
      %p77 = scmp.ne.s32.totalorder %s66, %s69
      %p78 = scmp.eq.s32.totalorder %s21, 1
      %p79 = por %p77, %p78
      %p80 = scmp.ne.s32.totalorder %s69, %s70
      %p81 = scmp.eq.s32.totalorder %s21, 0
      %p82 = por %p80, %p81
      %p83 = scmp.ne.s32.totalorder %s69, %s70
      %p84 = scmp.eq.s32.totalorder %s22, 1
      %p85 = por %p83, %p84
      %p87 = scmp.ne.s32.totalorder %s70, %s86
      %p88 = scmp.eq.s32.totalorder %s22, 0
      %p89 = por %p87, %p88
      %s90 = ssub.s32 %s23, %s35
      %p91 = scmp.eq.s32.totalorder %s90, 0
      %s93 = sadd.s32 %s92, 1
      %s94 = scalar_select %p91, %s92, %s93
      %p97 = pneg %p91
      %p98 = scmp.eq.s32.totalorder %s16, 1
      %p99 = por %p97, %p98
      %p100 = scmp.ne.s32.totalorder %s92, %s95
      %p101 = scmp.eq.s32.totalorder %s16, 0
      %p102 = por %p100, %p101
      %p103 = scmp.ne.s32.totalorder %s92, %s95
      %p104 = scmp.eq.s32.totalorder %s21, 1
      %p105 = por %p103, %p104
      %p106 = scmp.ne.s32.totalorder %s95, %s96
      %p107 = scmp.eq.s32.totalorder %s21, 0
      %p108 = por %p106, %p107
      %p109 = scmp.ne.s32.totalorder %s95, %s96
      %p110 = scmp.eq.s32.totalorder %s22, 1
      %p111 = por %p109, %p110
      %p113 = scmp.ne.s32.totalorder %s96, %s112
      %p114 = scmp.eq.s32.totalorder %s22, 0
      %p115 = por %p113, %p114
      %s117 = sadd.s32 %s116, 1
      %p120 = scmp.eq.s32.totalorder %s16, 1
      %p121 = scmp.ne.s32.totalorder %s116, %s118
      %p122 = scmp.eq.s32.totalorder %s16, 0
      %p123 = por %p121, %p122
      %p124 = scmp.ne.s32.totalorder %s116, %s118
      %p125 = scmp.eq.s32.totalorder %s21, 1
      %p126 = por %p124, %p125
      %p127 = scmp.ne.s32.totalorder %s118, %s119
      %p128 = scmp.eq.s32.totalorder %s21, 0
      %p129 = por %p127, %p128
      %p130 = scmp.ne.s32.totalorder %s118, %s119
      %p131 = scmp.eq.s32.totalorder %s22, 1
      %p132 = por %p130, %p131
      %p134 = scmp.ne.s32.totalorder %s119, %s133
      %p135 = scmp.eq.s32.totalorder %s22, 0
      %p136 = por %p134, %p135
      %s138 = sadd.s32 %s137, 1
      %p141 = scmp.eq.s32.totalorder %s16, 1
      %p142 = scmp.ne.s32.totalorder %s137, %s139
      %p143 = scmp.eq.s32.totalorder %s16, 0
      %p144 = por %p142, %p143
      %p145 = scmp.ne.s32.totalorder %s137, %s139
      %p146 = scmp.eq.s32.totalorder %s21, 1
      %p147 = por %p145, %p146
      %p148 = scmp.ne.s32.totalorder %s139, %s140
      %p149 = scmp.eq.s32.totalorder %s21, 0
      %p150 = por %p148, %p149
      %p151 = scmp.ne.s32.totalorder %s139, %s140
      %p152 = scmp.eq.s32.totalorder %s22, 1
      %p153 = por %p151, %p152
      %p155 = scmp.ne.s32.totalorder %s140, %s154
      %p156 = scmp.eq.s32.totalorder %s22, 0
      %p157 = por %p155, %p156
      %s159 = sadd.s32 %s158, 1
      %p162 = scmp.eq.s32.totalorder %s16, 1
      %p163 = scmp.ne.s32.totalorder %s158, %s160
      %p164 = scmp.eq.s32.totalorder %s16, 0
      %p165 = por %p163, %p164
      %p166 = scmp.ne.s32.totalorder %s158, %s160
      %p167 = scmp.eq.s32.totalorder %s21, 1
      %p168 = por %p166, %p167
      %p169 = scmp.ne.s32.totalorder %s160, %s161
      %p170 = scmp.eq.s32.totalorder %s21, 0
      %p171 = por %p169, %p170
      %p172 = scmp.ne.s32.totalorder %s160, %s161
      %p173 = scmp.eq.s32.totalorder %s22, 1
      %p174 = por %p172, %p173
      %p176 = scmp.ne.s32.totalorder %s161, %s175
      %p177 = scmp.eq.s32.totalorder %s22, 0
      %p178 = por %p176, %p177
      %s180 = sadd.s32 %s179, 1
      %p183 = scmp.eq.s32.totalorder %s16, 1
      %p184 = scmp.ne.s32.totalorder %s179, %s181
      %p185 = scmp.eq.s32.totalorder %s16, 0
      %p186 = por %p184, %p185
      %p187 = scmp.ne.s32.totalorder %s179, %s181
      %p188 = scmp.eq.s32.totalorder %s21, 1
      %p189 = por %p187, %p188
      %p190 = scmp.ne.s32.totalorder %s181, %s182
      %p191 = scmp.eq.s32.totalorder %s21, 0
      %p192 = por %p190, %p191
      %p193 = scmp.ne.s32.totalorder %s181, %s182
      %p194 = scmp.eq.s32.totalorder %s22, 1
      %p195 = por %p193, %p194
      %p197 = scmp.ne.s32.totalorder %s182, %s196
      %p198 = scmp.eq.s32.totalorder %s22, 0
      %p199 = por %p197, %p198
      %s200 = ssub.s32 %s23, %s35
      %s201 = ssub.s32 %s24, %s31
      %s202 = sor.u32 %s200, %s201
      %p203 = scmp.eq.s32.totalorder %s202, 0
      %s205 = sadd.s32 %s204, 1
      %s206 = scalar_select %p203, %s204, %s205
      %p209 = pneg %p203
      %p210 = scmp.eq.s32.totalorder %s16, 1
      %p211 = por %p209, %p210
      %p212 = scmp.ne.s32.totalorder %s204, %s207
      %p213 = scmp.eq.s32.totalorder %s16, 0
      %p214 = por %p212, %p213
      %p215 = scmp.ne.s32.totalorder %s204, %s207
      %p216 = scmp.eq.s32.totalorder %s21, 1
      %p217 = por %p215, %p216
      %p218 = scmp.ne.s32.totalorder %s207, %s208
      %p219 = scmp.eq.s32.totalorder %s21, 0
      %p220 = por %p218, %p219
      %p221 = scmp.ne.s32.totalorder %s207, %s208
      %p222 = scmp.eq.s32.totalorder %s22, 1
      %p223 = por %p221, %p222
      %p225 = scmp.ne.s32.totalorder %s208, %s224
      %p226 = scmp.eq.s32.totalorder %s22, 0
      %p227 = por %p225, %p226
      %p228 = scmp.le.s32.totalorder 1, %s16
      %p229 = scmp.lt.s32.totalorder %s16, 3
      %p230 = pnand %p228, %p229
      %p231 = pneg %p230
      // Predicated region
      $region9: #{tpu_custom_call.1} parent=5 // pred_check
        _
      $region10: #{tpu_custom_call.1} parent=5 // pred_check_branch
        %233 = sbr.rel (%p230) target = $region12
      $region11: #{tpu_custom_call.1} parent=5 // pred_region
        %s234 = ssub.s32 %s16, 1
        // Predicated region
        $region13: #{tpu_custom_call.1} parent=11 // pred_check
          %p235 = pneg %p129
        $region14: #{tpu_custom_call.1} parent=11 // pred_check_branch
          %237 = sbr.rel (%p235) target = $region16
        $region15: #{tpu_custom_call.1} parent=11 // pred_region
          _
        $region16: #{tpu_custom_call.1} parent=11 // pred_fallthru
          _
        // Predicated region
        $region17: #{tpu_custom_call.1} parent=11 // pred_check
          %p238 = pneg %p150
        $region18: #{tpu_custom_call.1} parent=11 // pred_check_branch
          %240 = sbr.rel (%p238) target = $region20
        $region19: #{tpu_custom_call.1} parent=11 // pred_region
          _
        $region20: #{tpu_custom_call.1} parent=11 // pred_fallthru
          _
        // Predicated region
        $region21: #{tpu_custom_call.1} parent=11 // pred_check
          %p241 = pneg %p171
        $region22: #{tpu_custom_call.1} parent=11 // pred_check_branch
          %243 = sbr.rel (%p241) target = $region24
        $region23: #{tpu_custom_call.1} parent=11 // pred_region
          _
        $region24: #{tpu_custom_call.1} parent=11 // pred_fallthru
          _
        // Predicated region
        $region25: #{tpu_custom_call.1} parent=11 // pred_check
          %p244 = pneg %p192
        $region26: #{tpu_custom_call.1} parent=11 // pred_check_branch
          %246 = sbr.rel (%p244) target = $region28
        $region27: #{tpu_custom_call.1} parent=11 // pred_region
          _
        $region28: #{tpu_custom_call.1} parent=11 // pred_fallthru
          _
      $region12: #{tpu_custom_call.1} parent=5 // pred_fallthru
        _
      %p247 = scmp.lt.s32.totalorder %s16, 2
      // Predicated region
      $region29: #{tpu_custom_call.1} parent=5 // pred_check
        %p248 = pneg %p247
      $region30: #{tpu_custom_call.1} parent=5 // pred_check_branch
        %250 = sbr.rel (%p248) target = $region32
      $region31: #{tpu_custom_call.1} parent=5 // pred_region
        // Predicated region
        $region33: #{tpu_custom_call.1} parent=31 // pred_check
          %p251 = pneg %p50
        $region34: #{tpu_custom_call.1} parent=31 // pred_check_branch
          %253 = sbr.rel (%p251) target = $region36
        $region35: #{tpu_custom_call.1} parent=31 // pred_region
          %p254 = scmp.lt.s32.totalorder %s23, 1
          %s255 = scalar_select %p254, %s23, 1
          %p256 = scmp.lt.s32.totalorder %s24, 0
          %s257 = scalar_select %p256, %s24, 0
          %s258 = sadd.s32 %s257, %s255
          %s259 = smul.addr %s258, 4
          %s260 = scalar_lea.vmem %s0, %s259
        $region36: #{tpu_custom_call.1} parent=31 // pred_fallthru
          _
        // Predicated region
        $region37: #{tpu_custom_call.1} parent=31 // pred_check
          %p261 = pneg %p76
        $region38: #{tpu_custom_call.1} parent=31 // pred_check_branch
          %263 = sbr.rel (%p261) target = $region40
        $region39: #{tpu_custom_call.1} parent=31 // pred_region
          %p264 = scmp.lt.s32.totalorder %s23, 1
          %s265 = scalar_select %p264, %s23, 1
          %s266 = smul.addr %s265, 4
          %s267 = scalar_lea.vmem %s1, %s266
        $region40: #{tpu_custom_call.1} parent=31 // pred_fallthru
          _
        // Predicated region
        $region41: #{tpu_custom_call.1} parent=31 // pred_check
          %p268 = pneg %p102
        $region42: #{tpu_custom_call.1} parent=31 // pred_check_branch
          %270 = sbr.rel (%p268) target = $region44
        $region43: #{tpu_custom_call.1} parent=31 // pred_region
          %p271 = scmp.lt.s32.totalorder %s23, 1
          %s272 = scalar_select %p271, %s23, 1
          %s273 = smul.addr %s272, 4
          %s274 = scalar_lea.vmem %s2, %s273
        $region44: #{tpu_custom_call.1} parent=31 // pred_fallthru
          _
      $region32: #{tpu_custom_call.1} parent=5 // pred_fallthru
        _
      %p275 = scmp.le.s32.totalorder 1, %s16
      %p276 = scmp.lt.s32.totalorder %s16, 3
      %p277 = pnand %p275, %p276
      %p278 = pneg %p277
      // Predicated region
      $region45: #{tpu_custom_call.1} parent=5 // pred_check
        _
      $region46: #{tpu_custom_call.1} parent=5 // pred_check_branch
        %280 = sbr.rel (%p277) target = $region48
      $region47: #{tpu_custom_call.1} parent=5 // pred_region
        %s281 = ssub.s32 %s16, 1
        %p282 = scmp.lt.s32.totalorder %s25, 1
        %s283 = scalar_select %p282, %s25, 1
        %p284 = scmp.lt.s32.totalorder %s26, 0
        %s285 = scalar_select %p284, %s26, 0
        %s286 = sadd.s32 %s285, %s283
        %s287 = smul.addr %s286, 4
        %s288 = scalar_lea.vmem %s0, %s287
        %p289 = pneg %p56
        %p290 = pneg %p53
        %p291 = scmp.lt.s32.totalorder %s25, 1
        %s292 = scalar_select %p291, %s25, 1
        %s293 = smul.addr %s292, 4
        %s294 = scalar_lea.vmem %s1, %s293
        %p295 = pneg %p82
        %p296 = pneg %p79
        %p297 = scmp.lt.s32.totalorder %s25, 1
        %s298 = scalar_select %p297, %s25, 1
        %s299 = smul.addr %s298, 4
        %s300 = scalar_lea.vmem %s2, %s299
        %p301 = pneg %p108
        %p302 = pneg %p105
        %p303 = pneg %p129
        %p304 = pneg %p126
        %p305 = pneg %p150
        %p306 = pneg %p147
        %p307 = pneg %p171
        %p308 = pneg %p168
        %p309 = pneg %p192
        %p310 = pneg %p189
        %p311 = pneg %p220
        %p312 = pneg %p217
        %s313 = sand.u32 %s207, 1
        %s314 = scalar_lea.sflag [#allocation7], %s313
        %s315 = sand.u32 %s207, 1
        %s316 = smul.addr %s315, 8
        %s317 = scalar_lea.vmem [#allocation6], %s316
        %p318 = scmp.lt.s32.totalorder %s25, 1
        %s319 = scalar_select %p318, %s25, 1
        %p320 = scmp.lt.s32.totalorder %s26, 0
        %s321 = scalar_select %p320, %s26, 0
        %s322 = sadd.s32 %s321, %s319
        %s323 = smul.addr %s322, 4
        %s324 = scalar_lea.vmem %s0, %s323
        %p325 = scmp.lt.s32.totalorder %s25, 1
        %s326 = scalar_select %p325, %s25, 1
        %s327 = smul.addr %s326, 4
        %s328 = scalar_lea.vmem %s1, %s327
        %p329 = scmp.lt.s32.totalorder %s25, 1
        %s330 = scalar_select %p329, %s25, 1
        %s331 = smul.addr %s330, 4
        %s332 = scalar_lea.vmem %s2, %s331
        %p334 = scmp.eq.s32.totalorder %s26, 0
        // Predicated region
        $region49: #{tpu_custom_call.1} parent=47 // pred_check
          %p335 = pneg %p334
        $region50: #{tpu_custom_call.1} parent=47 // pred_check_branch
          %337 = sbr.rel (%p335) target = $region52
        $region51: #{tpu_custom_call.1} parent=47 // pred_region
          %v338 = vld [vmem:[%s328] sm:$0xf]
          %v339 = vld [vmem:[%s4] sm:$0xff]
          %v340 = vld [vmem:[%s4 + $0x8] sm:$0xff]
          %v341 = vld [vmem:[%s4 + $0x10] sm:$0xff]
          %v342 = vld [vmem:[%s4 + $0x18] sm:$0xff]
          %v347 = vunpack.c.l.b16 %v339
          %v348 = vunpack.c.h.b16 %v339
          %v349 = vunpack.c.l.b16 %v340
          %v350 = vunpack.c.h.b16 %v340
          %v351 = vunpack.c.l.b16 %v341
          %v352 = vunpack.c.h.b16 %v341
          %v353 = vunpack.c.l.b16 %v342
          %v354 = vunpack.c.h.b16 %v342
          %v355 = vpack.c.b16 %v349, %v347
          %v356 = vpack.c.b16 %v350, %v348
          %v357 = vpack.c.b16 %v353, %v351
          %v358 = vpack.c.b16 %v354, %v352
          %vm363 = vcmask 261120
          %v365 = vsel %vm363, %v338, 0
          %367 = vmatprep.subr.bf16.mxu0 %v356
          %368 = vmatpush1.bf16.msra.mxu0 %v355
          %369 = vmatprep.subr.bf16.mxu0 %v358
          %370 = vmatpush1.bf16.msra.mxu0 %v357
          %371 = vmatprep.subr.bf16.mxu0 0
          %372 = vmatpush1.bf16.msra.mxu0 0
          %373 = vmatprep.subr.bf16.mxu0 0
          %374 = vmatpush1.bf16.msra.mxu0 0
          %375 = vmatprep.subr.bf16.mxu0 0
          %376 = vmatpush1.bf16.msra.mxu0 0
          %377 = vmatprep.subr.bf16.mxu0 0
          %378 = vmatpush1.bf16.msra.mxu0 0
          %379 = vmatprep.subr.bf16.mxu0 0
          %380 = vmatpush1.bf16.msra.mxu0 0
          %381 = vmatprep.subr.bf16.mxu0 0
          %382 = vmatpush1.bf16.msra.mxu0 0
          %383 = vmatprep.subr.bf16.mxu0 0
          %384 = vmatpush1.bf16.msra.mxu0 0
          %385 = vmatprep.subr.bf16.mxu0 0
          %386 = vmatpush1.bf16.msra.mxu0 0
          %387 = vmatprep.subr.bf16.mxu0 0
          %388 = vmatpush1.bf16.msra.mxu0 0
          %389 = vmatprep.subr.bf16.mxu0 0
          %390 = vmatpush1.bf16.msra.mxu0 0
          %391 = vmatprep.subr.bf16.mxu0 0
          %392 = vmatpush1.bf16.msra.mxu0 0
          %393 = vmatprep.subr.bf16.mxu0 0
          %394 = vmatpush1.bf16.msra.mxu0 0
          %395 = vmatprep.subr.bf16.mxu0 0
          %396 = vmatpush1.bf16.msra.mxu0 0
          %397 = vmatprep.subr.bf16.mxu0 0
          %398 = vmatpush1.bf16.msra.mxu0 0
          %399 = vmatprep.mubr.bf16.mxu0 0
          %400 = vmatmul.mubr.bf16.gmra.mrb[0].mxu0 %v365
          %v401 = vpop.f32.mrb[0].mxu0
          %v402 = vadd.f32 0.0, %v401
          %v403 = vpop.f32.mrb[0].mxu0
          %v404 = vadd.f32 0.0, %v403
          %v405 = vpop.f32.mrb[0].mxu0
          %v406 = vpop.f32.mrb[0].mxu0
          %407 = vdwg.mxu0
          %v408 = vpack.c.bf16 %v402, %v402
          %v409 = vpack.c.bf16 %v404, %v404
          %v412 = vunpack.c.l.b16 %v408
          %v413 = vunpack.c.l.b16 %v409
          %v414 = vpack.c.b16 %v413, %v412
          %416 = vst [vmem:[#allocation3] sm:$0xff] %v414
          %v417 = vld [vmem:[%s332] sm:$0xf]
          %v418 = vld [vmem:[%s5] sm:$0xff]
          %v419 = vld [vmem:[%s5 + $0x8] sm:$0xff]
          %v420 = vld [vmem:[%s5 + $0x10] sm:$0xff]
          %v421 = vld [vmem:[%s5 + $0x18] sm:$0xff]
          %v426 = vunpack.c.l.b16 %v418
          %v427 = vunpack.c.h.b16 %v418
          %v428 = vunpack.c.l.b16 %v419
          %v429 = vunpack.c.h.b16 %v419
          %v430 = vunpack.c.l.b16 %v420
          %v431 = vunpack.c.h.b16 %v420
          %v432 = vunpack.c.l.b16 %v421
          %v433 = vunpack.c.h.b16 %v421
          %v434 = vpack.c.b16 %v428, %v426
          %v435 = vpack.c.b16 %v429, %v427
          %v436 = vpack.c.b16 %v432, %v430
          %v437 = vpack.c.b16 %v433, %v431
          %v443 = vsel %vm363, %v417, 0
          %445 = vmatprep.subr.bf16.mxu0 %v435
          %446 = vmatpush1.bf16.msra.mxu0 %v434
          %447 = vmatprep.subr.bf16.mxu0 %v437
          %448 = vmatpush1.bf16.msra.mxu0 %v436
          %449 = vmatprep.subr.bf16.mxu0 0
          %450 = vmatpush1.bf16.msra.mxu0 0
          %451 = vmatprep.subr.bf16.mxu0 0
          %452 = vmatpush1.bf16.msra.mxu0 0
          %453 = vmatprep.subr.bf16.mxu0 0
          %454 = vmatpush1.bf16.msra.mxu0 0
          %455 = vmatprep.subr.bf16.mxu0 0
          %456 = vmatpush1.bf16.msra.mxu0 0
          %457 = vmatprep.subr.bf16.mxu0 0
          %458 = vmatpush1.bf16.msra.mxu0 0
          %459 = vmatprep.subr.bf16.mxu0 0
          %460 = vmatpush1.bf16.msra.mxu0 0
          %461 = vmatprep.subr.bf16.mxu0 0
          %462 = vmatpush1.bf16.msra.mxu0 0
          %463 = vmatprep.subr.bf16.mxu0 0
          %464 = vmatpush1.bf16.msra.mxu0 0
          %465 = vmatprep.subr.bf16.mxu0 0
          %466 = vmatpush1.bf16.msra.mxu0 0
          %467 = vmatprep.subr.bf16.mxu0 0
          %468 = vmatpush1.bf16.msra.mxu0 0
          %469 = vmatprep.subr.bf16.mxu0 0
          %470 = vmatpush1.bf16.msra.mxu0 0
          %471 = vmatprep.subr.bf16.mxu0 0
          %472 = vmatpush1.bf16.msra.mxu0 0
          %473 = vmatprep.subr.bf16.mxu0 0
          %474 = vmatpush1.bf16.msra.mxu0 0
          %475 = vmatprep.subr.bf16.mxu0 0
          %476 = vmatpush1.bf16.msra.mxu0 0
          %477 = vmatprep.mubr.bf16.mxu0 0
          %478 = vmatmul.mubr.bf16.gmra.mrb[0].mxu0 %v443
          %v479 = vpop.f32.mrb[0].mxu0
          %v480 = vadd.f32 0.0, %v479
          %v481 = vpop.f32.mrb[0].mxu0
          %v482 = vadd.f32 0.0, %v481
          %v483 = vpop.f32.mrb[0].mxu0
          %v484 = vpop.f32.mrb[0].mxu0
          %485 = vdwg.mxu0
          %v486 = vpack.c.bf16 %v480, %v480
          %v487 = vpack.c.bf16 %v482, %v482
          %v490 = vunpack.c.l.b16 %v486
          %v491 = vunpack.c.l.b16 %v487
          %v492 = vpack.c.b16 %v491, %v490
          %494 = vst [vmem:[#allocation4] sm:$0xff] %v492
        $region52: #{tpu_custom_call.1} parent=47 // pred_fallthru
          _
        %v495 = vld [vmem:[%s324] sm:$0xf]
        %v496 = vld [vmem:[%s3] sm:$0xff]
        %v497 = vld [vmem:[%s3 + $0x8] sm:$0xff]
        %v498 = vld [vmem:[%s3 + $0x10] sm:$0xff]
        %v499 = vld [vmem:[%s3 + $0x18] sm:$0xff]
        %v504 = vunpack.c.l.b16 %v496
        %v505 = vunpack.c.h.b16 %v496
        %v506 = vunpack.c.l.b16 %v497
        %v507 = vunpack.c.h.b16 %v497
        %v508 = vunpack.c.l.b16 %v498
        %v509 = vunpack.c.h.b16 %v498
        %v510 = vunpack.c.l.b16 %v499
        %v511 = vunpack.c.h.b16 %v499
        %v512 = vpack.c.b16 %v506, %v504
        %v513 = vpack.c.b16 %v507, %v505
        %v514 = vpack.c.b16 %v510, %v508
        %v515 = vpack.c.b16 %v511, %v509
        %vm520 = vcmask 261120
        %v522 = vsel %vm520, %v495, 0
        %524 = vmatprep.subr.bf16.mxu0 %v513
        %525 = vmatpush1.bf16.msra.mxu0 %v512
        %526 = vmatprep.subr.bf16.mxu0 %v515
        %527 = vmatpush1.bf16.msra.mxu0 %v514
        %528 = vmatprep.subr.bf16.mxu0 0
        %529 = vmatpush1.bf16.msra.mxu0 0
        %530 = vmatprep.subr.bf16.mxu0 0
        %531 = vmatpush1.bf16.msra.mxu0 0
        %532 = vmatprep.subr.bf16.mxu0 0
        %533 = vmatpush1.bf16.msra.mxu0 0
        %534 = vmatprep.subr.bf16.mxu0 0
        %535 = vmatpush1.bf16.msra.mxu0 0
        %536 = vmatprep.subr.bf16.mxu0 0
        %537 = vmatpush1.bf16.msra.mxu0 0
        %538 = vmatprep.subr.bf16.mxu0 0
        %539 = vmatpush1.bf16.msra.mxu0 0
        %540 = vmatprep.subr.bf16.mxu0 0
        %541 = vmatpush1.bf16.msra.mxu0 0
        %542 = vmatprep.subr.bf16.mxu0 0
        %543 = vmatpush1.bf16.msra.mxu0 0
        %544 = vmatprep.subr.bf16.mxu0 0
        %545 = vmatpush1.bf16.msra.mxu0 0
        %546 = vmatprep.subr.bf16.mxu0 0
        %547 = vmatpush1.bf16.msra.mxu0 0
        %548 = vmatprep.subr.bf16.mxu0 0
        %549 = vmatpush1.bf16.msra.mxu0 0
        %550 = vmatprep.subr.bf16.mxu0 0
        %551 = vmatpush1.bf16.msra.mxu0 0
        %552 = vmatprep.subr.bf16.mxu0 0
        %553 = vmatpush1.bf16.msra.mxu0 0
        %554 = vmatprep.subr.bf16.mxu0 0
        %555 = vmatpush1.bf16.msra.mxu0 0
        %556 = vmatprep.mubr.bf16.mxu0 0
        %557 = vmatmul.mubr.bf16.gmra.mrb[0].mxu0 %v522
        %v558 = vpop.f32.mrb[0].mxu0
        %v559 = vadd.f32 0.0, %v558
        %v560 = vpop.f32.mrb[0].mxu0
        %v561 = vadd.f32 0.0, %v560
        %v562 = vpop.f32.mrb[0].mxu0
        %v563 = vpop.f32.mrb[0].mxu0
        %564 = vdwg.mxu0
        %v565 = vpack.c.bf16 %v559, %v559
        %v566 = vpack.c.bf16 %v561, %v561
        %v569 = vunpack.c.l.b16 %v565
        %v570 = vunpack.c.l.b16 %v566
        %v571 = vpack.c.b16 %v570, %v569
        %573 = vst [vmem:[#allocation2] sm:$0xff] %v571
        %574 = vst.msk [vmem:[#allocation5] sm:$0xff] %vm520, 0.0
        %v575 = vld [vmem:[#allocation2] sm:$0xf]
        %v576 = vld [vmem:[#allocation3] sm:$0xf]
        %v577 = vld [vmem:[#allocation4] sm:$0xf]
        %578 = vmatprep.subr.bf16.mxu0 0
        %579 = vmatpush1.bf16.xpose.msra.mxu0 %v576
        %580 = vmatprep.subr.bf16.mxu0 0
        %581 = vmatpush1.bf16.xpose.msra.mxu0 0
        %582 = vmatprep.subr.bf16.mxu0 0
        %583 = vmatpush1.bf16.xpose.msra.mxu0 0
        %584 = vmatprep.subr.bf16.mxu0 0
        %585 = vmatpush1.bf16.xpose.msra.mxu0 0
        %586 = vmatprep.subr.bf16.mxu0 0
        %587 = vmatpush1.bf16.xpose.msra.mxu0 0
        %588 = vmatprep.subr.bf16.mxu0 0
        %589 = vmatpush1.bf16.xpose.msra.mxu0 0
        %590 = vmatprep.subr.bf16.mxu0 0
        %591 = vmatpush1.bf16.xpose.msra.mxu0 0
        %592 = vmatprep.subr.bf16.mxu0 0
        %593 = vmatpush1.bf16.xpose.msra.mxu0 0
        %594 = vmatprep.subr.bf16.mxu0 0
        %595 = vmatpush1.bf16.xpose.msra.mxu0 0
        %596 = vmatprep.subr.bf16.mxu0 0
        %597 = vmatpush1.bf16.xpose.msra.mxu0 0
        %598 = vmatprep.subr.bf16.mxu0 0
        %599 = vmatpush1.bf16.xpose.msra.mxu0 0
        %600 = vmatprep.subr.bf16.mxu0 0
        %601 = vmatpush1.bf16.xpose.msra.mxu0 0
        %602 = vmatprep.subr.bf16.mxu0 0
        %603 = vmatpush1.bf16.xpose.msra.mxu0 0
        %604 = vmatprep.subr.bf16.mxu0 0
        %605 = vmatpush1.bf16.xpose.msra.mxu0 0
        %606 = vmatprep.subr.bf16.mxu0 0
        %607 = vmatpush1.bf16.xpose.msra.mxu0 0
        %608 = vmatprep.subr.bf16.mxu0 0
        %609 = vmatpush1.bf16.xpose.msra.mxu0 0
        %610 = vmatprep.mubr.bf16.mxu0 0
        %611 = vmatmul.mubr.bf16.gmra.mrb[0].mxu0 %v575
        %v612 = vpop.f32.mrb[0].mxu0
        %v613 = vadd.f32 0.0, %v612
        %v614 = vpop.f32.mrb[0].mxu0
        %v615 = vpop.f32.mrb[0].mxu0
        %v616 = vpop.f32.mrb[0].mxu0
        %617 = vdwg.mxu0
        %vm618 = vcmask 64512
        %v619 = vsel %vm618, %v613, -inf
        %620 = vmax.xlane.f32.xlu0 %v619
        %v621 = vpop.xlane.xlu0 %620
        %v622 = vsub.f32 %v613, %v621
        %v623 = vmul.f32 %v622, 1.442695
        %v624 = vpow.pop %v623
        %v625 = vsel %vm618, %v624, 0.0
        %626 = vadd.xlane.f32.xlu0 %v625
        %v627 = vpop.xlane.xlu0 %626
        %v628 = vrcp.pop %v627
        %v629 = vmul.f32 %v624, %v628
        %v630 = vpack.c.bf16 %v629, %v629
        %v632 = vsel %vm618, %v630, 0
        %vm634 = vcmask 1043456
        %v636 = vsel %vm634, %v577, 0
        %638 = vmatprep.subr.bf16.mxu0 0
        %639 = vmatpush1.bf16.msra.mxu0 %v636
        %640 = vmatprep.subr.bf16.mxu0 0
        %641 = vmatpush1.bf16.msra.mxu0 0
        %642 = vmatprep.subr.bf16.mxu0 0
        %643 = vmatpush1.bf16.msra.mxu0 0
        %644 = vmatprep.subr.bf16.mxu0 0
        %645 = vmatpush1.bf16.msra.mxu0 0
        %646 = vmatprep.subr.bf16.mxu0 0
        %647 = vmatpush1.bf16.msra.mxu0 0
        %648 = vmatprep.subr.bf16.mxu0 0
        %649 = vmatpush1.bf16.msra.mxu0 0
        %650 = vmatprep.subr.bf16.mxu0 0
        %651 = vmatpush1.bf16.msra.mxu0 0
        %652 = vmatprep.subr.bf16.mxu0 0
        %653 = vmatpush1.bf16.msra.mxu0 0
        %654 = vmatprep.subr.bf16.mxu0 0
        %655 = vmatpush1.bf16.msra.mxu0 0
        %656 = vmatprep.subr.bf16.mxu0 0
        %657 = vmatpush1.bf16.msra.mxu0 0
        %658 = vmatprep.subr.bf16.mxu0 0
        %659 = vmatpush1.bf16.msra.mxu0 0
        %660 = vmatprep.subr.bf16.mxu0 0
        %661 = vmatpush1.bf16.msra.mxu0 0
        %662 = vmatprep.subr.bf16.mxu0 0
        %663 = vmatpush1.bf16.msra.mxu0 0
        %664 = vmatprep.subr.bf16.mxu0 0
        %665 = vmatpush1.bf16.msra.mxu0 0
        %666 = vmatprep.subr.bf16.mxu0 0
        %667 = vmatpush1.bf16.msra.mxu0 0
        %668 = vmatprep.subr.bf16.mxu0 0
        %669 = vmatpush1.bf16.msra.mxu0 0
        %670 = vmatprep.mubr.bf16.mxu0 0
        %671 = vmatmul.mubr.bf16.gmra.mrb[0].mxu0 %v632
        %v672 = vpop.f32.mrb[0].mxu0
        %v673 = vadd.f32 0.0, %v672
        %v674 = vpop.f32.mrb[0].mxu0
        %v675 = vpop.f32.mrb[0].mxu0
        %v676 = vpop.f32.mrb[0].mxu0
        %677 = vdwg.mxu0
        %v678 = vld [vmem:[#allocation5] sm:$0xff]
        %v679 = vpack.c.bf16 %v673, %v673
        %v680 = vld [vmem:[%s6] sm:$0xf]
        %v681 = vld [vmem:[%s6 + $0x4] sm:$0xf]
        %v682 = vld [vmem:[%s6 + $0x8] sm:$0xf]
        %v683 = vld [vmem:[%s6 + $0xc] sm:$0xf]
        %v684 = vld [vmem:[%s6 + $0x10] sm:$0xf]
        %v685 = vld [vmem:[%s6 + $0x14] sm:$0xf]
        %v686 = vld [vmem:[%s6 + $0x18] sm:$0xf]
        %v687 = vld [vmem:[%s6 + $0x1c] sm:$0xf]
        %v688 = vld [vmem:[%s6 + $0x20] sm:$0xf]
        %v689 = vld [vmem:[%s6 + $0x24] sm:$0xf]
        %v690 = vld [vmem:[%s6 + $0x28] sm:$0xf]
        %v691 = vld [vmem:[%s6 + $0x2c] sm:$0xf]
        %v692 = vld [vmem:[%s6 + $0x30] sm:$0xf]
        %v693 = vld [vmem:[%s6 + $0x34] sm:$0xf]
        %v694 = vld [vmem:[%s6 + $0x38] sm:$0xf]
        %v695 = vld [vmem:[%s6 + $0x3c] sm:$0xf]
        %v712 = vunpack.c.l.b16 %v680
        %v713 = vunpack.c.l.b16 %v681
        %v714 = vunpack.c.l.b16 %v682
        %v715 = vunpack.c.l.b16 %v683
        %v716 = vunpack.c.l.b16 %v684
        %v717 = vunpack.c.l.b16 %v685
        %v718 = vunpack.c.l.b16 %v686
        %v719 = vunpack.c.l.b16 %v687
        %v720 = vunpack.c.l.b16 %v688
        %v721 = vunpack.c.l.b16 %v689
        %v722 = vunpack.c.l.b16 %v690
        %v723 = vunpack.c.l.b16 %v691
        %v724 = vunpack.c.l.b16 %v692
        %v725 = vunpack.c.l.b16 %v693
        %v726 = vunpack.c.l.b16 %v694
        %v727 = vunpack.c.l.b16 %v695
        %v728 = vpack.c.b16 %v713, %v712
        %v729 = vpack.c.b16 %v715, %v714
        %v730 = vpack.c.b16 %v717, %v716
        %v731 = vpack.c.b16 %v719, %v718
        %v732 = vpack.c.b16 %v721, %v720
        %v733 = vpack.c.b16 %v723, %v722
        %v734 = vpack.c.b16 %v725, %v724
        %v735 = vpack.c.b16 %v727, %v726
        %744 = vmatprep.subr.bf16.mxu0 0
        %745 = vmatpush1.bf16.msra.mxu0 %v728
        %746 = vmatprep.subr.bf16.mxu0 0
        %747 = vmatpush1.bf16.msra.mxu0 %v729
        %748 = vmatprep.subr.bf16.mxu0 0
        %749 = vmatpush1.bf16.msra.mxu0 %v730
        %750 = vmatprep.subr.bf16.mxu0 0
        %751 = vmatpush1.bf16.msra.mxu0 %v731
        %752 = vmatprep.subr.bf16.mxu0 0
        %753 = vmatpush1.bf16.msra.mxu0 %v732
        %754 = vmatprep.subr.bf16.mxu0 0
        %755 = vmatpush1.bf16.msra.mxu0 %v733
        %756 = vmatprep.subr.bf16.mxu0 0
        %757 = vmatpush1.bf16.msra.mxu0 %v734
        %758 = vmatprep.subr.bf16.mxu0 0
        %759 = vmatpush1.bf16.msra.mxu0 %v735
        %760 = vmatprep.subr.bf16.mxu0 0
        %761 = vmatpush1.bf16.msra.mxu0 0
        %762 = vmatprep.subr.bf16.mxu0 0
        %763 = vmatpush1.bf16.msra.mxu0 0
        %764 = vmatprep.subr.bf16.mxu0 0
        %765 = vmatpush1.bf16.msra.mxu0 0
        %766 = vmatprep.subr.bf16.mxu0 0
        %767 = vmatpush1.bf16.msra.mxu0 0
        %768 = vmatprep.subr.bf16.mxu0 0
        %769 = vmatpush1.bf16.msra.mxu0 0
        %770 = vmatprep.subr.bf16.mxu0 0
        %771 = vmatpush1.bf16.msra.mxu0 0
        %772 = vmatprep.subr.bf16.mxu0 0
        %773 = vmatpush1.bf16.msra.mxu0 0
        %774 = vmatprep.subr.bf16.mxu0 0
        %775 = vmatpush1.bf16.msra.mxu0 0
        %776 = vmatprep.mubr.bf16.mxu0 0
        %777 = vmatmul.mubr.bf16.gmra.mrb[0].mxu0 %v679
        %v778 = vpop.f32.mrb[0].mxu0
        %v779 = vadd.f32 0.0, %v778
        %v780 = vpop.f32.mrb[0].mxu0
        %v781 = vpop.f32.mrb[0].mxu0
        %v782 = vpop.f32.mrb[0].mxu0
        %783 = vdwg.mxu0
        %v784 = vadd.f32 %v678, %v779
        %785 = vst.msk [vmem:[#allocation5] sm:$0xff] %vm520, %v784
        %s786 = scalar_lea.vmem [#allocation2], 4
        %v787 = vld [vmem:[%s786] sm:$0xf]
        %s788 = scalar_lea.vmem [#allocation3], 4
        %v789 = vld [vmem:[%s788] sm:$0xf]
        %s790 = scalar_lea.vmem [#allocation4], 4
        %v791 = vld [vmem:[%s790] sm:$0xf]
        %792 = vmatprep.subr.bf16.mxu0 0
        %793 = vmatpush1.bf16.xpose.msra.mxu0 %v789
        %794 = vmatprep.subr.bf16.mxu0 0
        %795 = vmatpush1.bf16.xpose.msra.mxu0 0
        %796 = vmatprep.subr.bf16.mxu0 0
        %797 = vmatpush1.bf16.xpose.msra.mxu0 0
        %798 = vmatprep.subr.bf16.mxu0 0
        %799 = vmatpush1.bf16.xpose.msra.mxu0 0
        %800 = vmatprep.subr.bf16.mxu0 0
        %801 = vmatpush1.bf16.xpose.msra.mxu0 0
        %802 = vmatprep.subr.bf16.mxu0 0
        %803 = vmatpush1.bf16.xpose.msra.mxu0 0
        %804 = vmatprep.subr.bf16.mxu0 0
        %805 = vmatpush1.bf16.xpose.msra.mxu0 0
        %806 = vmatprep.subr.bf16.mxu0 0
        %807 = vmatpush1.bf16.xpose.msra.mxu0 0
        %808 = vmatprep.subr.bf16.mxu0 0
        %809 = vmatpush1.bf16.xpose.msra.mxu0 0
        %810 = vmatprep.subr.bf16.mxu0 0
        %811 = vmatpush1.bf16.xpose.msra.mxu0 0
        %812 = vmatprep.subr.bf16.mxu0 0
        %813 = vmatpush1.bf16.xpose.msra.mxu0 0
        %814 = vmatprep.subr.bf16.mxu0 0
        %815 = vmatpush1.bf16.xpose.msra.mxu0 0
        %816 = vmatprep.subr.bf16.mxu0 0
        %817 = vmatpush1.bf16.xpose.msra.mxu0 0
        %818 = vmatprep.subr.bf16.mxu0 0
        %819 = vmatpush1.bf16.xpose.msra.mxu0 0
        %820 = vmatprep.subr.bf16.mxu0 0
        %821 = vmatpush1.bf16.xpose.msra.mxu0 0
        %822 = vmatprep.subr.bf16.mxu0 0
        %823 = vmatpush1.bf16.xpose.msra.mxu0 0
        %824 = vmatprep.mubr.bf16.mxu0 0
        %825 = vmatmul.mubr.bf16.gmra.mrb[0].mxu0 %v787
        %v826 = vpop.f32.mrb[0].mxu0
        %v827 = vadd.f32 0.0, %v826
        %v828 = vpop.f32.mrb[0].mxu0
        %v829 = vpop.f32.mrb[0].mxu0
        %v830 = vpop.f32.mrb[0].mxu0
        %831 = vdwg.mxu0
        %v832 = vsel %vm618, %v827, -inf
        %833 = vmax.xlane.f32.xlu0 %v832
        %v834 = vpop.xlane.xlu0 %833
        %v835 = vsub.f32 %v827, %v834
        %v836 = vmul.f32 %v835, 1.442695
        %v837 = vpow.pop %v836
        %v838 = vsel %vm618, %v837, 0.0
        %839 = vadd.xlane.f32.xlu0 %v838
        %v840 = vpop.xlane.xlu0 %839
        %v841 = vrcp.pop %v840
        %v842 = vmul.f32 %v837, %v841
        %v843 = vpack.c.bf16 %v842, %v842
        %v845 = vsel %vm618, %v843, 0
        %v848 = vsel %vm634, %v791, 0
        %850 = vmatprep.subr.bf16.mxu0 0
        %851 = vmatpush1.bf16.msra.mxu0 %v848
        %852 = vmatprep.subr.bf16.mxu0 0
        %853 = vmatpush1.bf16.msra.mxu0 0
        %854 = vmatprep.subr.bf16.mxu0 0
        %855 = vmatpush1.bf16.msra.mxu0 0
        %856 = vmatprep.subr.bf16.mxu0 0
        %857 = vmatpush1.bf16.msra.mxu0 0
        %858 = vmatprep.subr.bf16.mxu0 0
        %859 = vmatpush1.bf16.msra.mxu0 0
        %860 = vmatprep.subr.bf16.mxu0 0
        %861 = vmatpush1.bf16.msra.mxu0 0
        %862 = vmatprep.subr.bf16.mxu0 0
        %863 = vmatpush1.bf16.msra.mxu0 0
        %864 = vmatprep.subr.bf16.mxu0 0
        %865 = vmatpush1.bf16.msra.mxu0 0
        %866 = vmatprep.subr.bf16.mxu0 0
        %867 = vmatpush1.bf16.msra.mxu0 0
        %868 = vmatprep.subr.bf16.mxu0 0
        %869 = vmatpush1.bf16.msra.mxu0 0
        %870 = vmatprep.subr.bf16.mxu0 0
        %871 = vmatpush1.bf16.msra.mxu0 0
        %872 = vmatprep.subr.bf16.mxu0 0
        %873 = vmatpush1.bf16.msra.mxu0 0
        %874 = vmatprep.subr.bf16.mxu0 0
        %875 = vmatpush1.bf16.msra.mxu0 0
        %876 = vmatprep.subr.bf16.mxu0 0
        %877 = vmatpush1.bf16.msra.mxu0 0
        %878 = vmatprep.subr.bf16.mxu0 0
        %879 = vmatpush1.bf16.msra.mxu0 0
        %880 = vmatprep.subr.bf16.mxu0 0
        %881 = vmatpush1.bf16.msra.mxu0 0
        %882 = vmatprep.mubr.bf16.mxu0 0
        %883 = vmatmul.mubr.bf16.gmra.mrb[0].mxu0 %v845
        %v884 = vpop.f32.mrb[0].mxu0
        %v885 = vadd.f32 0.0, %v884
        %v886 = vpop.f32.mrb[0].mxu0
        %v887 = vpop.f32.mrb[0].mxu0
        %v888 = vpop.f32.mrb[0].mxu0
        %889 = vdwg.mxu0
        %v890 = vld [vmem:[#allocation5] sm:$0xff]
        %v891 = vpack.c.bf16 %v885, %v885
        %s892 = scalar_lea.vmem %s6, 64
        %v893 = vld [vmem:[%s892] sm:$0xf]
        %v894 = vld [vmem:[%s892 + $0x4] sm:$0xf]
        %v895 = vld [vmem:[%s892 + $0x8] sm:$0xf]
        %v896 = vld [vmem:[%s892 + $0xc] sm:$0xf]
        %v897 = vld [vmem:[%s892 + $0x10] sm:$0xf]
        %v898 = vld [vmem:[%s892 + $0x14] sm:$0xf]
        %v899 = vld [vmem:[%s892 + $0x18] sm:$0xf]
        %v900 = vld [vmem:[%s892 + $0x1c] sm:$0xf]
        %v901 = vld [vmem:[%s892 + $0x20] sm:$0xf]
        %v902 = vld [vmem:[%s892 + $0x24] sm:$0xf]
        %v903 = vld [vmem:[%s892 + $0x28] sm:$0xf]
        %v904 = vld [vmem:[%s892 + $0x2c] sm:$0xf]
        %v905 = vld [vmem:[%s892 + $0x30] sm:$0xf]
        %v906 = vld [vmem:[%s892 + $0x34] sm:$0xf]
        %v907 = vld [vmem:[%s892 + $0x38] sm:$0xf]
        %v908 = vld [vmem:[%s892 + $0x3c] sm:$0xf]
        %v925 = vunpack.c.l.b16 %v893
        %v926 = vunpack.c.l.b16 %v894
        %v927 = vunpack.c.l.b16 %v895
        %v928 = vunpack.c.l.b16 %v896
        %v929 = vunpack.c.l.b16 %v897
        %v930 = vunpack.c.l.b16 %v898
        %v931 = vunpack.c.l.b16 %v899
        %v932 = vunpack.c.l.b16 %v900
        %v933 = vunpack.c.l.b16 %v901
        %v934 = vunpack.c.l.b16 %v902
        %v935 = vunpack.c.l.b16 %v903
        %v936 = vunpack.c.l.b16 %v904
        %v937 = vunpack.c.l.b16 %v905
        %v938 = vunpack.c.l.b16 %v906
        %v939 = vunpack.c.l.b16 %v907
        %v940 = vunpack.c.l.b16 %v908
        %v941 = vpack.c.b16 %v926, %v925
        %v942 = vpack.c.b16 %v928, %v927
        %v943 = vpack.c.b16 %v930, %v929
        %v944 = vpack.c.b16 %v932, %v931
        %v945 = vpack.c.b16 %v934, %v933
        %v946 = vpack.c.b16 %v936, %v935
        %v947 = vpack.c.b16 %v938, %v937
        %v948 = vpack.c.b16 %v940, %v939
        %957 = vmatprep.subr.bf16.mxu0 0
        %958 = vmatpush1.bf16.msra.mxu0 %v941
        %959 = vmatprep.subr.bf16.mxu0 0
        %960 = vmatpush1.bf16.msra.mxu0 %v942
        %961 = vmatprep.subr.bf16.mxu0 0
        %962 = vmatpush1.bf16.msra.mxu0 %v943
        %963 = vmatprep.subr.bf16.mxu0 0
        %964 = vmatpush1.bf16.msra.mxu0 %v944
        %965 = vmatprep.subr.bf16.mxu0 0
        %966 = vmatpush1.bf16.msra.mxu0 %v945
        %967 = vmatprep.subr.bf16.mxu0 0
        %968 = vmatpush1.bf16.msra.mxu0 %v946
        %969 = vmatprep.subr.bf16.mxu0 0
        %970 = vmatpush1.bf16.msra.mxu0 %v947
        %971 = vmatprep.subr.bf16.mxu0 0
        %972 = vmatpush1.bf16.msra.mxu0 %v948
        %973 = vmatprep.subr.bf16.mxu0 0
        %974 = vmatpush1.bf16.msra.mxu0 0
        %975 = vmatprep.subr.bf16.mxu0 0
        %976 = vmatpush1.bf16.msra.mxu0 0
        %977 = vmatprep.subr.bf16.mxu0 0
        %978 = vmatpush1.bf16.msra.mxu0 0
        %979 = vmatprep.subr.bf16.mxu0 0
        %980 = vmatpush1.bf16.msra.mxu0 0
        %981 = vmatprep.subr.bf16.mxu0 0
        %982 = vmatpush1.bf16.msra.mxu0 0
        %983 = vmatprep.subr.bf16.mxu0 0
        %984 = vmatpush1.bf16.msra.mxu0 0
        %985 = vmatprep.subr.bf16.mxu0 0
        %986 = vmatpush1.bf16.msra.mxu0 0
        %987 = vmatprep.subr.bf16.mxu0 0
        %988 = vmatpush1.bf16.msra.mxu0 0
        %989 = vmatprep.mubr.bf16.mxu0 0
        %990 = vmatmul.mubr.bf16.gmra.mrb[0].mxu0 %v891
        %v991 = vpop.f32.mrb[0].mxu0
        %v992 = vadd.f32 0.0, %v991
        %v993 = vpop.f32.mrb[0].mxu0
        %v994 = vpop.f32.mrb[0].mxu0
        %v995 = vpop.f32.mrb[0].mxu0
        %996 = vdwg.mxu0
        %v997 = vadd.f32 %v890, %v992
        %998 = vst.msk [vmem:[#allocation5] sm:$0xff] %vm520, %v997
        %v999 = vld [vmem:[#allocation5] sm:$0xff]
        %1000 = vst.msk [vmem:[%s317] sm:$0xff] %vm520, %v999
        %s1001 = sand.u32 %s207, 1
        %s1002 = scalar_lea.sflag [#allocation7], %s1001
        %s1003 = sand.u32 %s207, 1
        %s1004 = smul.addr %s1003, 8
        %s1005 = scalar_lea.vmem [#allocation6], %s1004
        // Predicated region
        $region53: #{tpu_custom_call.1} parent=47 // pred_check
          %p1006 = pneg %p217
        $region54: #{tpu_custom_call.1} parent=47 // pred_check_branch
          %1008 = sbr.rel (%p1006) target = $region56
        $region55: #{tpu_custom_call.1} parent=47 // pred_region
          %s1010 = ssub.s32 128, 128
          %1011 = vsyncadd %s1002, %s1010
          %s1012 = sadd.s32 %s26, %s25
          %s1013 = smul.addr %s1012, 128
          %s1014 = scalar_lea.hbm %s7, %s1013
          %s1016 = sshll.u32 %s1005, 4
          %s1017 = int_to_ptr.vmem [resolvable:$true] %s1016
          %1019 = dma.vmem_to_hbm [thread:$0]  %s1017, 128, %s1014, %s1002
        $region56: #{tpu_custom_call.1} parent=47 // pred_fallthru
          _
      $region48: #{tpu_custom_call.1} parent=5 // pred_fallthru
        _
      %p1020 = scmp.le.s32.totalorder 2, %s16
      // Predicated region
      $region57: #{tpu_custom_call.1} parent=5 // pred_check
        %p1021 = pneg %p1020
      $region58: #{tpu_custom_call.1} parent=5 // pred_check_branch
        %1023 = sbr.rel (%p1021) target = $region60
      $region59: #{tpu_custom_call.1} parent=5 // pred_region
        %s1024 = ssub.s32 %s16, 2
        // Predicated region
        $region61: #{tpu_custom_call.1} parent=59 // pred_check
          %p1025 = pneg %p223
        $region62: #{tpu_custom_call.1} parent=59 // pred_check_branch
          %1027 = sbr.rel (%p1025) target = $region64
        $region63: #{tpu_custom_call.1} parent=59 // pred_region
          %s1028 = sand.u32 %s208, 1
          %s1029 = scalar_lea.sflag [#allocation7], %s1028
          %s1030 = sand.u32 %s208, 1
          %s1031 = smul.addr %s1030, 8
          %s1032 = scalar_lea.vmem [#allocation6], %s1031
          %1033 = dma.done %s1029, 128
        $region64: #{tpu_custom_call.1} parent=59 // pred_fallthru
          _
      $region60: #{tpu_custom_call.1} parent=5 // pred_fallthru
        _
    $region6: #{tpu_custom_call.1} parent=1 // loop_footer
      %s20 = sadd.s32 1, %s16
    $region7: #{tpu_custom_call.1} parent=1 // loop_footer_branch
      %15 = sbr.rel target = $region3
    $region8: #{tpu_custom_call.1} parent=1 // loop_exit
      _
    %1034 = vsyncpa [#allocation7], 1
    %s1035 = scalar_lea.sflag [#allocation7], 1
    %1036 = vsyncpa %s1035, 1

</llo_original>
